<compile_context>
chip_gen: v5e
topology: v5e:2x2
jax: 0.10.0
libtpu: 0.0.40
codegen_flags: <defaults>
</compile_context>

<pallas_src>
import functools

import jax
import jax.numpy as jnp
from jax.experimental import pallas as pl
from jax.experimental.pallas import tpu as pltpu


def _round_up(x, m):
    return (x + m - 1) // m * m


def _vmem_capacity_bytes():
    try:
        return int(pltpu.get_tpu_info().vmem_capacity_bytes)
    except Exception:
        return 64 * 1024 * 1024  # conservative (v7x per-core)


def _vmem_limit_bytes():
    cap = _vmem_capacity_bytes()
    # ~85% of physical, capped at 100 MiB: ~54 MiB on v7x, ~100 MiB on v5e/v6e.
    return min(int(cap * 0.85), 100 * 1024 * 1024)


def _default_row_tile():
    # Bigger tiles amortize per-grid-step overhead on v5e/v6e (128 MiB VMEM);
    # stay smaller on v7x (64 MiB per TensorCore).
    return 512 if _vmem_capacity_bytes() >= 96 * 1024 * 1024 else 256


def pack_masked_layer_params(wv, bv, wi, bi, wm, compute_dtype=jnp.bfloat16):
    """Pack + pad + cast weights ONCE (hoisted out of the per-call path).

    wv, wi, wm: (in_features, out_features);  bv, bi: (out_features,)
    """
    IN, OUT = wv.shape
    in_pad = _round_up(IN, 128)
    out_pad = _round_up(OUT, 128)

    def pad_w(w):
        return jnp.pad(w, ((0, in_pad - IN), (0, out_pad - OUT)))

    def pad_b(b):
        return jnp.pad(b.reshape(1, OUT), ((0, 0), (0, out_pad - OUT)))

    wvi = jnp.concatenate([pad_w(wv), pad_w(wi)], axis=1).astype(compute_dtype)
    wm_p = pad_w(wm).astype(compute_dtype)
    bvi = jnp.concatenate([pad_b(bv), pad_b(bi)], axis=1).astype(jnp.float32)
    return dict(wvi=wvi, bvi=bvi, wm=wm_p,
                in_features=IN, out_features=OUT,
                in_pad=in_pad, out_pad=out_pad)


def masked_layer_kernel(v_ref, m_ref, wvi_ref, bvi_ref, wm_ref,
                        out_ref, mask_out_ref, *, out_pad):
    # Fused [values_proj | interpolation] MXU pass; accumulate in f32.
    vi = jnp.dot(v_ref[...], wvi_ref[...],
                 preferred_element_type=jnp.float32) + bvi_ref[...]
    out = vi[:, :out_pad]        # values_proj(values)   (static 128-aligned slice)
    interp = vi[:, out_pad:]     # interpolation(values)

    # mask_transform(mask), no bias.
    mask_t = jnp.dot(m_ref[...], wm_ref[...], preferred_element_type=jnp.float32)

    # f32 epilogue: out += interp * mask
    out_ref[...] = (out + interp * mask_t).astype(out_ref.dtype)
    mask_out_ref[...] = mask_t.astype(mask_out_ref.dtype)


def masked_layer(values, mask, packed, *, row_tile=None, out_dtype=None):
    """values, mask: (B, S, in_features). Returns (out, mask_t): (B, S, out_features)."""
    B, S, IN = values.shape
    assert IN == packed["in_features"]
    OUT = packed["out_features"]
    in_pad, out_pad = packed["in_pad"], packed["out_pad"]
    compute_dtype = packed["wvi"].dtype
    out_dtype = out_dtype or values.dtype
    N = B * S

    # Activations: flatten rows, pad features only if needed, cast to compute
    # dtype (pad fuses with the cast - a single pass over the activations).
    def prep(x):
        x2 = x.reshape(N, IN)
        if in_pad != IN:
            x2 = jnp.pad(x2, ((0, 0), (0, in_pad - IN)))
        return x2.astype(compute_dtype)

    v2 = prep(values)
    m2 = prep(mask)

    # Row tiling: no row padding (Pallas drops OOB rows of the last block);
    # keep the tile a multiple of the sublane pack for the compute dtype and
    # force >= 2 grid steps when rows allow it (v7x has 2 TensorCores).
    if row_tile is None:
        row_tile = _default_row_tile()
    sublane = 16 if jnp.dtype(compute_dtype).itemsize < 4 else 8
    n_al = _round_up(N, sublane)
    row_tile = min(row_tile, n_al)
    if n_al >= 2 * sublane:
        row_tile = min(row_tile, _round_up(pl.cdiv(n_al, 2), sublane))
    grid = (pl.cdiv(N, row_tile),)

    row_spec = pl.BlockSpec((row_tile, in_pad), lambda i: (i, 0))
    resident = pl.Buffered(1)  # constant index_map -> single VMEM copy
    wvi_spec = pl.BlockSpec((in_pad, 2 * out_pad), lambda i: (0, 0),
                            pipeline_mode=resident)
    bvi_spec = pl.BlockSpec((1, 2 * out_pad), lambda i: (0, 0),
                            pipeline_mode=resident)
    wm_spec = pl.BlockSpec((in_pad, out_pad), lambda i: (0, 0),
                           pipeline_mode=resident)
    out_spec = pl.BlockSpec((row_tile, out_pad), lambda i: (i, 0))

    w_bytes = (packed["wvi"].size + packed["wm"].size) * packed["wvi"].dtype.itemsize
    cost = pl.CostEstimate(
        flops=6 * N * IN * OUT + 3 * N * OUT,
        transcendentals=0,
        bytes_accessed=(2 * N * in_pad * jnp.dtype(compute_dtype).itemsize
                        + w_bytes + packed["bvi"].size * 4
                        + 2 * N * out_pad * jnp.dtype(out_dtype).itemsize),
    )

    out, mask_t = pl.pallas_call(
        functools.partial(masked_layer_kernel, out_pad=out_pad),
        out_shape=(
            jax.ShapeDtypeStruct((N, out_pad), out_dtype),
            jax.ShapeDtypeStruct((N, out_pad), out_dtype),
        ),
        grid_spec=pltpu.PrefetchScalarGridSpec(
            num_scalar_prefetch=0,
            grid=grid,
            in_specs=[row_spec, row_spec, wvi_spec, bvi_spec, wm_spec],
            out_specs=[out_spec, out_spec],
        ),
        compiler_params=pltpu.CompilerParams(
            dimension_semantics=("parallel",),
            vmem_limit_bytes=_vmem_limit_bytes(),
        ),
        cost_estimate=cost,
    )(v2, m2, packed["wvi"], packed["bvi"], packed["wm"])

    if out_pad != OUT:
        out = out[:, :OUT]
        mask_t = mask_t[:, :OUT]
    return out.reshape(B, S, OUT), mask_t.reshape(B, S, OUT)


def init_params(key, in_features, out_features):
    """Deterministic synthetic init matching the PyTorch module's shapes."""
    k1, k2, k3, k4, k5 = jax.random.split(key, 5)
    bound = 1.0 / jnp.sqrt(in_features)
    # nn.Linear default-ish uniform init (stored transposed: (in, out))
    wv = jax.random.uniform(k1, (in_features, out_features), jnp.float32, -bound, bound)
    bv = jax.random.uniform(k2, (out_features,), jnp.float32, -bound, bound)
    wi = jax.random.uniform(k3, (in_features, out_features), jnp.float32, -bound, bound)
    bi = jax.random.uniform(k4, (out_features,), jnp.float32, -bound, bound)
    # mask_transform: normal_(std=0.02), no bias
    wm = 0.02 * jax.random.normal(k5, (in_features, out_features), jnp.float32)
    return wv, bv, wi, bi, wm


if __name__ == "__main__":
    key = jax.random.PRNGKey(0)
    kv, km, kp = jax.random.split(key, 3)

    batch, seq, in_features, out_features = 2, 8, 32, 32
    values = jax.random.normal(kv, (batch, seq, in_features), jnp.float32)
    mask = jax.random.normal(km, (batch, seq, in_features), jnp.float32)

    wv, bv, wi, bi, wm = init_params(kp, in_features, out_features)

    # Pure-JAX reference
    out_ref = values @ wv + bv
    interp_ref = values @ wi + bi
    mask_ref = mask @ wm
    out_ref = out_ref + interp_ref * mask_ref

    # Default path: bf16 MXU compute, f32 epilogue/outputs (relaxed tolerance).
    packed = pack_masked_layer_params(wv, bv, wi, bi, wm)  # hoisted, done once
    out, mask_t = masked_layer(values, mask, packed)
    jax.block_until_ready((out, mask_t))
    assert out.shape == (batch, seq, out_features)
    assert mask_t.shape == (batch, seq, out_features)
    assert jnp.allclose(out, out_ref, atol=3e-2, rtol=3e-2)
    assert jnp.allclose(mask_t, mask_ref, atol=3e-2, rtol=3e-2)

    # f32 compute path: exact (tight tolerance).
    packed_f32 = pack_masked_layer_params(wv, bv, wi, bi, wm, compute_dtype=jnp.float32)
    out32, mask32 = masked_layer(values, mask, packed_f32)
    jax.block_until_ready((out32, mask32))
    assert jnp.allclose(out32, out_ref, atol=1e-5, rtol=1e-5)
    assert jnp.allclose(mask32, mask_ref, atol=1e-5, rtol=1e-5)

    print("KERNEL_OK")
</pallas_src>

<mosaic_0001>
module attributes {stable_mosaic.version = 11 : i64} {
  func.func @masked_layer_kernel(%arg0: i32, %arg1: memref<16x128xbf16, #tpu.memory_space<vmem>>, %arg2: memref<16x128xbf16, #tpu.memory_space<vmem>>, %arg3: memref<128x256xbf16, #tpu.memory_space<vmem>>, %arg4: memref<1x256xf32, #tpu.memory_space<vmem>>, %arg5: memref<128x128xbf16, #tpu.memory_space<vmem>>, %arg6: memref<16x128xf32, #tpu.memory_space<vmem>>, %arg7: memref<16x128xf32, #tpu.memory_space<vmem>>) attributes {dimension_semantics = [#tpu.dimension_semantics<parallel>], iteration_bounds = array<i64: 1>, scalar_prefetch = 0 : i64, scratch_operands = 0 : i64, tpu.core_type = #tpu.core_type<tc>, window_params = [{transform_indices = @transform_0, window_bounds = array<i64: 16, 128>}, {transform_indices = @transform_1, window_bounds = array<i64: 16, 128>}, {pipeline_mode = #tpu.pipeline_mode<synchronous>, transform_indices = @transform_2, window_bounds = array<i64: 128, 256>}, {pipeline_mode = #tpu.pipeline_mode<synchronous>, transform_indices = @transform_3, window_bounds = array<i64: 1, 256>}, {pipeline_mode = #tpu.pipeline_mode<synchronous>, transform_indices = @transform_4, window_bounds = array<i64: 128, 128>}, {transform_indices = @transform_5, window_bounds = array<i64: 16, 128>}, {transform_indices = @transform_6, window_bounds = array<i64: 16, 128>}]} {
    %c0 = arith.constant 0 : index
    %c0_0 = arith.constant 0 : index
    %0 = vector.load %arg1[%c0, %c0_0] : memref<16x128xbf16, #tpu.memory_space<vmem>>, vector<16x128xbf16>
    %c0_1 = arith.constant 0 : index
    %c0_2 = arith.constant 0 : index
    %1 = vector.load %arg3[%c0_1, %c0_2] : memref<128x256xbf16, #tpu.memory_space<vmem>>, vector<128x256xbf16>
    %cst = arith.constant dense<0.000000e+00> : vector<16x256xf32>
    %2 = tpu.matmul %0, %1, %cst {dimension_numbers = #tpu.dot_dimension_numbers<[1], [0], [0], [1], [0, 0, 1, 1], [], []>} : vector<16x128xbf16>, vector<128x256xbf16>, vector<16x256xf32> -> vector<16x256xf32>
    %c0_3 = arith.constant 0 : index
    %c0_4 = arith.constant 0 : index
    %3 = vector.load %arg4[%c0_3, %c0_4] : memref<1x256xf32, #tpu.memory_space<vmem>>, vector<1x256xf32>
    %4 = vector.broadcast %3 : vector<1x256xf32> to vector<16x256xf32>
    %5 = arith.addf %2, %4 : vector<16x256xf32>
    %6 = vector.extract_strided_slice %5 {offsets = [0, 0], sizes = [16, 128], strides = [1, 1]} : vector<16x256xf32> to vector<16x128xf32>
    %7 = vector.extract_strided_slice %5 {offsets = [0, 128], sizes = [16, 128], strides = [1, 1]} : vector<16x256xf32> to vector<16x128xf32>
    %c0_5 = arith.constant 0 : index
    %c0_6 = arith.constant 0 : index
    %8 = vector.load %arg2[%c0_5, %c0_6] : memref<16x128xbf16, #tpu.memory_space<vmem>>, vector<16x128xbf16>
    %c0_7 = arith.constant 0 : index
    %c0_8 = arith.constant 0 : index
    %9 = vector.load %arg5[%c0_7, %c0_8] : memref<128x128xbf16, #tpu.memory_space<vmem>>, vector<128x128xbf16>
    %cst_9 = arith.constant dense<0.000000e+00> : vector<16x128xf32>
    %10 = tpu.matmul %8, %9, %cst_9 {dimension_numbers = #tpu.dot_dimension_numbers<[1], [0], [0], [1], [0, 0, 1, 1], [], []>} : vector<16x128xbf16>, vector<128x128xbf16>, vector<16x128xf32> -> vector<16x128xf32>
    %11 = arith.mulf %7, %10 : vector<16x128xf32>
    %12 = arith.addf %6, %11 : vector<16x128xf32>
    %c0_10 = arith.constant 0 : index
    %c0_11 = arith.constant 0 : index
    %13 = vector.load %arg6[%c0_10, %c0_11] : memref<16x128xf32, #tpu.memory_space<vmem>>, vector<16x128xf32>
    tpu.vector_store %arg6[%c0_10, %c0_11], %12 {strides = array<i32>} : memref<16x128xf32, #tpu.memory_space<vmem>>, vector<16x128xf32>,
    %c0_12 = arith.constant 0 : index
    %c0_13 = arith.constant 0 : index
    %14 = vector.load %arg7[%c0_12, %c0_13] : memref<16x128xf32, #tpu.memory_space<vmem>>, vector<16x128xf32>
    tpu.vector_store %arg7[%c0_12, %c0_13], %10 {strides = array<i32>} : memref<16x128xf32, #tpu.memory_space<vmem>>, vector<16x128xf32>,
    return
  }
  func.func @transform_0(%arg0: i32) -> (i32, i32) {
    %c0_i32 = arith.constant 0 : i32
    %c0_i32_0 = arith.constant 0 : i32
    return %arg0, %c0_i32 : i32, i32
  }
  func.func @transform_1(%arg0: i32) -> (i32, i32) {
    %c0_i32 = arith.constant 0 : i32
    %c0_i32_0 = arith.constant 0 : i32
    return %arg0, %c0_i32 : i32, i32
  }
  func.func @transform_2(%arg0: i32) -> (i32, i32) {
    %c0_i32 = arith.constant 0 : i32
    %c0_i32_0 = arith.constant 0 : i32
    %c0_i32_1 = arith.constant 0 : i32
    return %c0_i32, %c0_i32_0 : i32, i32
  }
  func.func @transform_3(%arg0: i32) -> (i32, i32) {
    %c0_i32 = arith.constant 0 : i32
    %c0_i32_0 = arith.constant 0 : i32
    %c0_i32_1 = arith.constant 0 : i32
    return %c0_i32, %c0_i32_0 : i32, i32
  }
  func.func @transform_4(%arg0: i32) -> (i32, i32) {
    %c0_i32 = arith.constant 0 : i32
    %c0_i32_0 = arith.constant 0 : i32
    %c0_i32_1 = arith.constant 0 : i32
    return %c0_i32, %c0_i32_0 : i32, i32
  }
  func.func @transform_5(%arg0: i32) -> (i32, i32) {
    %c0_i32 = arith.constant 0 : i32
    %c0_i32_0 = arith.constant 0 : i32
    return %arg0, %c0_i32 : i32, i32
  }
  func.func @transform_6(%arg0: i32) -> (i32, i32) {
    %c0_i32 = arith.constant 0 : i32
    %c0_i32_0 = arith.constant 0 : i32
    return %arg0, %c0_i32 : i32, i32
  }
}

</mosaic_0001>

<llo_original>
// kernel: tpu_custom_call.1
$region0: #{tpu_custom_call.1}
  #allocation0 [shape = 'u32[]', space=smem, size = 0x4, offset = 0x4, fixed_abs, tag = 'smem constant byte address 0x4 - core index']
  #allocation1 [shape = 'u32[72,128]{1,0:T(1,128)}', space=vmem, size = 0x9000, scoped, tag = 'internal scratch']
  %s0 = inlined_call_operand.hbm [shape: bf16[16,128], index: 0, kind: input, shape index: {}]
  %s1 = inlined_call_operand.hbm [shape: bf16[16,128], index: 1, kind: input, shape index: {}]
  %s2 = inlined_call_operand.hbm [shape: bf16[128,256], index: 2, kind: input, shape index: {}]
  %s3 = inlined_call_operand.vmem [shape: f32[1,256], index: 3, kind: input, shape index: {}]
  %s4 = inlined_call_operand.hbm [shape: bf16[128,128], index: 4, kind: input, shape index: {}]
  %s5 = inlined_call_operand.hbm [shape: f32[16,128], index: 5, kind: output, shape index: {0}]
  %s6 = inlined_call_operand.hbm [shape: f32[16,128], index: 6, kind: output, shape index: {1}]
  %7 = xla_tuple %s5, %s6
  %s8 = sld [smem:[#allocation0]]
  $region54: #{tpu_custom_call.1} parent=0
    _
  %s10 = ssub.s32 1, %s8
  %s11 = scalar_select 0, %s10, %s8
  $region1: #{tpu_custom_call.1} parent=0
    #allocation2 [shape = 'u8[4096]{0}', space=vmem, size = 0x1000, scoped, tag = 'input window, operand 0, single buffered']
    #allocation3 [shape = 's32[1]{0}', space=sflag, size = 0x4, scoped, tag = 'scoped memory for tpu_custom_call.1']
    #allocation4 [shape = 's32[1]{0}', space=sflag, size = 0x4, scoped, tag = 'scoped memory for tpu_custom_call.1']
    #allocation5 [shape = 'u8[4096]{0}', space=vmem, size = 0x1000, scoped, tag = 'input window, operand 1, single buffered']
    #allocation6 [shape = 's32[1]{0}', space=sflag, size = 0x4, scoped, tag = 'scoped memory for tpu_custom_call.1']
    #allocation7 [shape = 'u8[65536]{0}', space=vmem, size = 0x10000, scoped, tag = 'input window, operand 2, single buffered']
    #allocation8 [shape = 'u8[32768]{0}', space=vmem, size = 0x8000, scoped, tag = 'input window, operand 4, single buffered']
    #allocation9 [shape = 's32[1]{0}', space=sflag, size = 0x4, scoped, tag = 'scoped memory for tpu_custom_call.1']
    #allocation10 [shape = 'u8[8192]{0}', space=vmem, size = 0x2000, scoped, tag = 'output window, operand 0, single buffered']
    #allocation11 [shape = 'u8[8192]{0}', space=vmem, size = 0x2000, scoped, tag = 'output window, operand 1, single buffered']
    #allocation12 [shape = 's32[1]{0}', space=sflag, size = 0x4, scoped, tag = 'scoped memory for tpu_custom_call.1']
    %12 = vsyncpa [#allocation3], 0
    %13 = vsyncpa [#allocation6], 0
    %14 = vsyncpa [#allocation9], 0
    %15 = vsyncpa [#allocation4], 0
    %16 = vsyncpa [#allocation12], 0
    // Predicated region
    $region2: #{tpu_custom_call.1} parent=1 // pred_check
      _
    $region3: #{tpu_custom_call.1} parent=1 // pred_check_branch
      %18 = sbr.rel (0) target = $region5
    $region4: #{tpu_custom_call.1} parent=1 // pred_region
      %20 = vsyncadd [#allocation3], 0
      %s21 = sshll.u32 %s0, 4
      %s22 = int_to_ptr.hbm [resolvable:$true] %s21
      %s23 = sshll.u32 [#allocation2], 4
      %s24 = int_to_ptr.vmem [resolvable:$true] %s23
      %29 = dma.hbm_to_vmem [thread:$0]  %s22, 128, %s24, [#allocation3], 64, 64, 4
    $region5: #{tpu_custom_call.1} parent=1 // pred_fallthru
      _
    // Predicated region
    $region6: #{tpu_custom_call.1} parent=1 // pred_check
      _
    $region7: #{tpu_custom_call.1} parent=1 // pred_check_branch
      %31 = sbr.rel (0) target = $region9
    $region8: #{tpu_custom_call.1} parent=1 // pred_region
      %33 = vsyncadd [#allocation6], 0
      %s34 = sshll.u32 %s1, 4
      %s35 = int_to_ptr.hbm [resolvable:$true] %s34
      %s36 = sshll.u32 [#allocation5], 4
      %s37 = int_to_ptr.vmem [resolvable:$true] %s36
      %42 = dma.hbm_to_vmem [thread:$0]  %s35, 128, %s37, [#allocation6], 64, 64, 4
    $region9: #{tpu_custom_call.1} parent=1 // pred_fallthru
      _
    // Predicated region
    $region10: #{tpu_custom_call.1} parent=1 // pred_check
      _
    $region11: #{tpu_custom_call.1} parent=1 // pred_check_branch
      %44 = sbr.rel (0) target = $region13
    $region12: #{tpu_custom_call.1} parent=1 // pred_region
      %46 = vsyncadd [#allocation6], 0
      %s47 = sshll.u32 %s2, 4
      %s48 = int_to_ptr.hbm [resolvable:$true] %s47
      %s49 = sshll.u32 [#allocation7], 4
      %s50 = int_to_ptr.vmem [resolvable:$true] %s49
      %55 = dma.hbm_to_vmem [thread:$0]  %s48, 2048, %s50, [#allocation6], 128, 128, 8
    $region13: #{tpu_custom_call.1} parent=1 // pred_fallthru
      _
    // Predicated region
    $region14: #{tpu_custom_call.1} parent=1 // pred_check
      _
    $region15: #{tpu_custom_call.1} parent=1 // pred_check_branch
      %57 = sbr.rel (0) target = $region17
    $region16: #{tpu_custom_call.1} parent=1 // pred_region
      _
    $region17: #{tpu_custom_call.1} parent=1 // pred_fallthru
      _
    // Predicated region
    $region18: #{tpu_custom_call.1} parent=1 // pred_check
      _
    $region19: #{tpu_custom_call.1} parent=1 // pred_check_branch
      %59 = sbr.rel (0) target = $region21
    $region20: #{tpu_custom_call.1} parent=1 // pred_region
      %61 = vsyncadd [#allocation9], 0
      %s62 = sshll.u32 %s4, 4
      %s63 = int_to_ptr.hbm [resolvable:$true] %s62
      %s64 = sshll.u32 [#allocation8], 4
      %s65 = int_to_ptr.vmem [resolvable:$true] %s64
      %70 = dma.hbm_to_vmem [thread:$0]  %s63, 1024, %s65, [#allocation9], 64, 64, 4
    $region21: #{tpu_custom_call.1} parent=1 // pred_fallthru
      _
    // Predicated region
    $region22: #{tpu_custom_call.1} parent=1 // pred_check
      _
    $region23: #{tpu_custom_call.1} parent=1 // pred_check_branch
      %72 = sbr.rel (0) target = $region25
    $region24: #{tpu_custom_call.1} parent=1 // pred_region
      %74 = dma.done [#allocation3], 128
    $region25: #{tpu_custom_call.1} parent=1 // pred_fallthru
      _
    // Predicated region
    $region26: #{tpu_custom_call.1} parent=1 // pred_check
      _
    $region27: #{tpu_custom_call.1} parent=1 // pred_check_branch
      %76 = sbr.rel (0) target = $region29
    $region28: #{tpu_custom_call.1} parent=1 // pred_region
      %78 = dma.done [#allocation6], 128
    $region29: #{tpu_custom_call.1} parent=1 // pred_fallthru
      _
    // Predicated region
    $region30: #{tpu_custom_call.1} parent=1 // pred_check
      _
    $region31: #{tpu_custom_call.1} parent=1 // pred_check_branch
      %80 = sbr.rel (0) target = $region33
    $region32: #{tpu_custom_call.1} parent=1 // pred_region
      %82 = dma.done [#allocation6], 2048
    $region33: #{tpu_custom_call.1} parent=1 // pred_fallthru
      _
    // Predicated region
    $region34: #{tpu_custom_call.1} parent=1 // pred_check
      _
    $region35: #{tpu_custom_call.1} parent=1 // pred_check_branch
      %84 = sbr.rel (0) target = $region37
    $region36: #{tpu_custom_call.1} parent=1 // pred_region
      %86 = dma.done [#allocation9], 1024
    $region37: #{tpu_custom_call.1} parent=1 // pred_fallthru
      _
    %v87 = vld [vmem:[#allocation2] sm:$0xf]
    %v88 = vld [vmem:[#allocation2 + $0x4] sm:$0xf]
    %v89 = vld [vmem:[#allocation7] sm:$0xff]
    %v90 = vld [vmem:[#allocation7 + $0x8] sm:$0xff]
    %v91 = vld [vmem:[#allocation7 + $0x10] sm:$0xff]
    %v92 = vld [vmem:[#allocation7 + $0x18] sm:$0xff]
    %v93 = vld [vmem:[#allocation7 + $0x20] sm:$0xff]
    %v94 = vld [vmem:[#allocation7 + $0x28] sm:$0xff]
    %v95 = vld [vmem:[#allocation7 + $0x30] sm:$0xff]
    %v96 = vld [vmem:[#allocation7 + $0x38] sm:$0xff]
    %v97 = vld [vmem:[#allocation7 + $0x40] sm:$0xff]
    %v98 = vld [vmem:[#allocation7 + $0x48] sm:$0xff]
    %v99 = vld [vmem:[#allocation7 + $0x50] sm:$0xff]
    %v100 = vld [vmem:[#allocation7 + $0x58] sm:$0xff]
    %v101 = vld [vmem:[#allocation7 + $0x60] sm:$0xff]
    %v102 = vld [vmem:[#allocation7 + $0x68] sm:$0xff]
    %v103 = vld [vmem:[#allocation7 + $0x70] sm:$0xff]
    %v104 = vld [vmem:[#allocation7 + $0x78] sm:$0xff]
    %v105 = vld [vmem:[%s3] sm:$0x3]
    %v107 = vperm.slane %v105, 0
    %v108 = vperm.slane %v105, 1
    %v113 = vunpack.c.l.b16 %v87
    %v114 = vunpack.c.l.b16 %v88
    %v115 = vpack.c.b16 %v114, %v113
    %v133 = vunpack.c.l.b16 %v89
    %v134 = vunpack.c.h.b16 %v89
    %v135 = vunpack.c.l.b16 %v90
    %v136 = vunpack.c.h.b16 %v90
    %v137 = vunpack.c.l.b16 %v91
    %v138 = vunpack.c.h.b16 %v91
    %v139 = vunpack.c.l.b16 %v92
    %v140 = vunpack.c.h.b16 %v92
    %v141 = vunpack.c.l.b16 %v93
    %v142 = vunpack.c.h.b16 %v93
    %v143 = vunpack.c.l.b16 %v94
    %v144 = vunpack.c.h.b16 %v94
    %v145 = vunpack.c.l.b16 %v95
    %v146 = vunpack.c.h.b16 %v95
    %v147 = vunpack.c.l.b16 %v96
    %v148 = vunpack.c.h.b16 %v96
    %v149 = vunpack.c.l.b16 %v97
    %v150 = vunpack.c.h.b16 %v97
    %v151 = vunpack.c.l.b16 %v98
    %v152 = vunpack.c.h.b16 %v98
    %v153 = vunpack.c.l.b16 %v99
    %v154 = vunpack.c.h.b16 %v99
    %v155 = vunpack.c.l.b16 %v100
    %v156 = vunpack.c.h.b16 %v100
    %v157 = vunpack.c.l.b16 %v101
    %v158 = vunpack.c.h.b16 %v101
    %v159 = vunpack.c.l.b16 %v102
    %v160 = vunpack.c.h.b16 %v102
    %v161 = vunpack.c.l.b16 %v103
    %v162 = vunpack.c.h.b16 %v103
    %v163 = vunpack.c.l.b16 %v104
    %v164 = vunpack.c.h.b16 %v104
    %v165 = vpack.c.b16 %v135, %v133
    %v166 = vpack.c.b16 %v136, %v134
    %v167 = vpack.c.b16 %v139, %v137
    %v168 = vpack.c.b16 %v140, %v138
    %v169 = vpack.c.b16 %v143, %v141
    %v170 = vpack.c.b16 %v144, %v142
    %v171 = vpack.c.b16 %v147, %v145
    %v172 = vpack.c.b16 %v148, %v146
    %v173 = vpack.c.b16 %v151, %v149
    %v174 = vpack.c.b16 %v152, %v150
    %v175 = vpack.c.b16 %v155, %v153
    %v176 = vpack.c.b16 %v156, %v154
    %v177 = vpack.c.b16 %v159, %v157
    %v178 = vpack.c.b16 %v160, %v158
    %v179 = vpack.c.b16 %v163, %v161
    %v180 = vpack.c.b16 %v164, %v162
    %197 = vmatpush.bf16.msra.mxu0 %v179
    %198 = vmatpush.bf16.msra.mxu0 %v177
    %199 = vmatpush.bf16.msra.mxu0 %v175
    %200 = vmatpush.bf16.msra.mxu0 %v173
    %201 = vmatpush.bf16.msra.mxu0 %v171
    %202 = vmatpush.bf16.msra.mxu0 %v169
    %203 = vmatpush.bf16.msra.mxu0 %v167
    %204 = vmatpush.bf16.msra.mxu0 %v165
    %205 = vmatmul.bf16.gmra.mxu0 %v115
    %v206 = vpop.f32.mrf.mxu0
    %v207 = vadd.f32 %v107, %v206
    %v208 = vpop.f32.mrf.mxu0
    %v209 = vadd.f32 %v107, %v208
    %210 = vdwg.mxu0
    %211 = vmatpush.bf16.msra.mxu0 %v180
    %212 = vmatpush.bf16.msra.mxu0 %v178
    %213 = vmatpush.bf16.msra.mxu0 %v176
    %214 = vmatpush.bf16.msra.mxu0 %v174
    %215 = vmatpush.bf16.msra.mxu0 %v172
    %216 = vmatpush.bf16.msra.mxu0 %v170
    %217 = vmatpush.bf16.msra.mxu0 %v168
    %218 = vmatpush.bf16.msra.mxu0 %v166
    %219 = vmatmul.bf16.gmra.mxu0 %v115
    %v220 = vpop.f32.mrf.mxu0
    %v221 = vadd.f32 %v108, %v220
    %v222 = vpop.f32.mrf.mxu0
    %v223 = vadd.f32 %v108, %v222
    %224 = vdwg.mxu0
    %v225 = vld [vmem:[#allocation5] sm:$0xf]
    %v226 = vld [vmem:[#allocation5 + $0x4] sm:$0xf]
    %v227 = vld [vmem:[#allocation8] sm:$0xf]
    %v228 = vld [vmem:[#allocation8 + $0x4] sm:$0xf]
    %v229 = vld [vmem:[#allocation8 + $0x8] sm:$0xf]
    %v230 = vld [vmem:[#allocation8 + $0xc] sm:$0xf]
    %v231 = vld [vmem:[#allocation8 + $0x10] sm:$0xf]
    %v232 = vld [vmem:[#allocation8 + $0x14] sm:$0xf]
    %v233 = vld [vmem:[#allocation8 + $0x18] sm:$0xf]
    %v234 = vld [vmem:[#allocation8 + $0x1c] sm:$0xf]
    %v235 = vld [vmem:[#allocation8 + $0x20] sm:$0xf]
    %v236 = vld [vmem:[#allocation8 + $0x24] sm:$0xf]
    %v237 = vld [vmem:[#allocation8 + $0x28] sm:$0xf]
    %v238 = vld [vmem:[#allocation8 + $0x2c] sm:$0xf]
    %v239 = vld [vmem:[#allocation8 + $0x30] sm:$0xf]
    %v240 = vld [vmem:[#allocation8 + $0x34] sm:$0xf]
    %v241 = vld [vmem:[#allocation8 + $0x38] sm:$0xf]
    %v242 = vld [vmem:[#allocation8 + $0x3c] sm:$0xf]
    %v245 = vunpack.c.l.b16 %v225
    %v246 = vunpack.c.l.b16 %v226
    %v247 = vpack.c.b16 %v246, %v245
    %v265 = vunpack.c.l.b16 %v227
    %v266 = vunpack.c.l.b16 %v228
    %v267 = vunpack.c.l.b16 %v229
    %v268 = vunpack.c.l.b16 %v230
    %v269 = vunpack.c.l.b16 %v231
    %v270 = vunpack.c.l.b16 %v232
    %v271 = vunpack.c.l.b16 %v233
    %v272 = vunpack.c.l.b16 %v234
    %v273 = vunpack.c.l.b16 %v235
    %v274 = vunpack.c.l.b16 %v236
    %v275 = vunpack.c.l.b16 %v237
    %v276 = vunpack.c.l.b16 %v238
    %v277 = vunpack.c.l.b16 %v239
    %v278 = vunpack.c.l.b16 %v240
    %v279 = vunpack.c.l.b16 %v241
    %v280 = vunpack.c.l.b16 %v242
    %v281 = vpack.c.b16 %v266, %v265
    %v282 = vpack.c.b16 %v268, %v267
    %v283 = vpack.c.b16 %v270, %v269
    %v284 = vpack.c.b16 %v272, %v271
    %v285 = vpack.c.b16 %v274, %v273
    %v286 = vpack.c.b16 %v276, %v275
    %v287 = vpack.c.b16 %v278, %v277
    %v288 = vpack.c.b16 %v280, %v279
    %297 = vmatpush.bf16.msra.mxu0 %v288
    %298 = vmatpush.bf16.msra.mxu0 %v287
    %299 = vmatpush.bf16.msra.mxu0 %v286
    %300 = vmatpush.bf16.msra.mxu0 %v285
    %301 = vmatpush.bf16.msra.mxu0 %v284
    %302 = vmatpush.bf16.msra.mxu0 %v283
    %303 = vmatpush.bf16.msra.mxu0 %v282
    %304 = vmatpush.bf16.msra.mxu0 %v281
    %305 = vmatmul.bf16.gmra.mxu0 %v247
    %v306 = vpop.f32.mrf.mxu0
    %v307 = vadd.f32 0.0, %v306
    %v308 = vpop.f32.mrf.mxu0
    %v309 = vadd.f32 0.0, %v308
    %310 = vdwg.mxu0
    %v311 = vmul.f32 %v221, %v307
    %v312 = vmul.f32 %v223, %v309
    %v313 = vadd.f32 %v207, %v311
    %v314 = vadd.f32 %v209, %v312
    %315 = vst [vmem:[#allocation10] sm:$0xff] %v313
    %316 = vst [vmem:[#allocation10 + $0x8] sm:$0xff] %v314
    %317 = vst [vmem:[#allocation11] sm:$0xff] %v307
    %318 = vst [vmem:[#allocation11 + $0x8] sm:$0xff] %v309
    // Predicated region
    $region38: #{tpu_custom_call.1} parent=1 // pred_check
      _
    $region39: #{tpu_custom_call.1} parent=1 // pred_check_branch
      %320 = sbr.rel (0) target = $region41
    $region40: #{tpu_custom_call.1} parent=1 // pred_region
      %322 = vsyncadd [#allocation4], 0
      %s323 = sshll.u32 [#allocation10], 4
      %s324 = int_to_ptr.vmem [resolvable:$true] %s323
      %s325 = sshll.u32 %s5, 4
      %s326 = int_to_ptr.hbm [resolvable:$true] %s325
      %331 = dma.vmem_to_hbm [thread:$0]  %s324, 256, %s326, [#allocation4], 128, 128, 8
    $region41: #{tpu_custom_call.1} parent=1 // pred_fallthru
      _
    // Predicated region
    $region42: #{tpu_custom_call.1} parent=1 // pred_check
      _
    $region43: #{tpu_custom_call.1} parent=1 // pred_check_branch
      %333 = sbr.rel (0) target = $region45
    $region44: #{tpu_custom_call.1} parent=1 // pred_region
      %335 = vsyncadd [#allocation12], 0
      %s336 = sshll.u32 [#allocation11], 4
      %s337 = int_to_ptr.vmem [resolvable:$true] %s336
      %s338 = sshll.u32 %s6, 4
      %s339 = int_to_ptr.hbm [resolvable:$true] %s338
      %344 = dma.vmem_to_hbm [thread:$0]  %s337, 256, %s339, [#allocation12], 128, 128, 8
    $region45: #{tpu_custom_call.1} parent=1 // pred_fallthru
      _
    // Predicated region
    $region46: #{tpu_custom_call.1} parent=1 // pred_check
      _
    $region47: #{tpu_custom_call.1} parent=1 // pred_check_branch
      %346 = sbr.rel (0) target = $region49
    $region48: #{tpu_custom_call.1} parent=1 // pred_region
      %348 = dma.done [#allocation4], 256
    $region49: #{tpu_custom_call.1} parent=1 // pred_fallthru
      _
    // Predicated region
    $region50: #{tpu_custom_call.1} parent=1 // pred_check
      _
    $region51: #{tpu_custom_call.1} parent=1 // pred_check_branch
      %350 = sbr.rel (0) target = $region53
    $region52: #{tpu_custom_call.1} parent=1 // pred_region
      %352 = dma.done [#allocation12], 256
    $region53: #{tpu_custom_call.1} parent=1 // pred_fallthru
      _
    %353 = vsyncpa [#allocation3], 1
    %354 = vsyncpa [#allocation6], 1
    %355 = vsyncpa [#allocation9], 1
    %356 = vsyncpa [#allocation4], 1
    %357 = vsyncpa [#allocation12], 1

</llo_original>
